<compile_context>
chip_gen: v7x
topology: tpu7x:2x2x1
jax: 0.10.0
libtpu: 0.0.40
codegen_flags: <defaults>
</compile_context>

<pallas_src>
import jax
import jax.numpy as jnp
import numpy as np
from jax.experimental import pallas as pl
from jax.experimental.pallas import tpu as pltpu

_LANES = 128          # lane width of the packed RHS / output slab
_SUBLANES = 8
# Column layout inside the 128-lane slab.
_COL_ENERGY = 0
_COL_CHARGE = 1
_COL_DIP0 = 2         # cols 2..4 = charge * (x, y, z)


def _round_up(x, m):
    return (x + m - 1) // m * m


# ----------------------------------------------------------------------------
# Pallas kernel: fused per-system {energy, total charge, dipole} segment sum
# ----------------------------------------------------------------------------
def _fused_segment_kernel(idx_ref, feat_ref, out_ref, acc_ref):
    """One atom tile of: out[s, :] += sum_{n : idx[n]==s} rhs[n, :].

    idx_ref  : (1, tN)        int32 system index per atom (-1 = padding)
    feat_ref : (tN, 128)      f32 cols [energy, charge, x, y, z, 0, ...]
    out_ref  : (S_pad, 128)   f32 lane-dense output slab (resident across grid)
    acc_ref  : (S_pad, 128)   f32 VMEM accumulator scratch
    """
    k = pl.program_id(0)

    @pl.when(k == 0)
    def _init():
        acc_ref[...] = jnp.zeros_like(acc_ref)

    s_pad = acc_ref.shape[0]
    t_n = idx_ref.shape[1]

    # scatter_add(dim=0) == one-hot matmul on the MXU.
    idx = idx_ref[...]                                            # (1, tN)
    seg_rows = jax.lax.broadcasted_iota(jnp.int32, (s_pad, t_n), 0)
    onehot = (seg_rows == idx).astype(jnp.float32)                # (S_pad, tN)

    feat = feat_ref[...]                                          # (tN, 128)
    charge = feat[:, _COL_CHARGE:_COL_CHARGE + 1]                 # (tN, 1)
    col = jax.lax.broadcasted_iota(jnp.int32, feat.shape, 1)
    is_dip = jnp.logical_and(col >= _COL_DIP0, col < _COL_DIP0 + 3)
    # Cols 0,1 pass through; cols 2..4 become charge * position (dipole contrib).
    rhs = jnp.where(is_dip, feat * charge, feat)                  # (tN, 128)

    # Single fused MXU matmul covering energy + total charge + dipole columns.
    acc_ref[...] += jnp.dot(onehot, rhs, preferred_element_type=jnp.float32)

    @pl.when(k == pl.num_programs(0) - 1)
    def _finalize():
        out_ref[...] = acc_ref[...]


def _fused_segment_forward(indices, per_atom_energy, per_atom_charge, positions,
                           num_systems, max_tile_n=1024):
    """Non-differentiable fused forward: returns (E_sys [S], Q_tot [S,1], dip [S,3])."""
    n = positions.shape[0]
    s = int(num_systems)
    s_pad = _round_up(max(s, 1), _SUBLANES)

    # Atom tile size must be a multiple of 128 (it is the lane axis of idx and
    # the sublane axis of feat); cap it so the double-buffered feat tiles stay
    # well under v7x's 32 MiB scoped VMEM.
    t_n = min(max_tile_n, _round_up(n, _LANES))
    n_pad = _round_up(n, t_n)

    feat = jnp.zeros((n_pad, _LANES), jnp.float32)
    feat = feat.at[:n, _COL_ENERGY].set(per_atom_energy.astype(jnp.float32))
    feat = feat.at[:n, _COL_CHARGE].set(per_atom_charge.astype(jnp.float32))
    feat = feat.at[:n, _COL_DIP0:_COL_DIP0 + 3].set(positions.astype(jnp.float32))

    idx = jnp.full((1, n_pad), -1, jnp.int32)        # -1 sentinel: padded atoms drop
    idx = idx.at[0, :n].set(indices.astype(jnp.int32))

    # TODO(synk): for large S, also tile the system axis (marked "parallel" for
    # megacore) and use PrefetchScalarGridSpec with per-atom-tile [seg_min,
    # seg_max] to skip empty (S-tile, atom-tile) blocks (indices are sorted).
    out = pl.pallas_call(
        _fused_segment_kernel,
        grid=(n_pad // t_n,),
        in_specs=[
            pl.BlockSpec((1, t_n), lambda k: (0, k)),
            pl.BlockSpec((t_n, _LANES), lambda k: (k, 0)),
        ],
        out_specs=pl.BlockSpec((s_pad, _LANES), lambda k: (0, 0)),
        out_shape=jax.ShapeDtypeStruct((s_pad, _LANES), jnp.float32),
        scratch_shapes=[pltpu.VMEM((s_pad, _LANES), jnp.float32)],
        compiler_params=pltpu.CompilerParams(
            dimension_semantics=("arbitrary",)),      # atom axis is a reduction
    )(idx, feat)

    per_system_energy = out[:s, _COL_ENERGY]                  # (S,)
    total_charge = out[:s, _COL_CHARGE:_COL_CHARGE + 1]       # (S, 1)
    dipole = out[:s, _COL_DIP0:_COL_DIP0 + 3]                 # (S, 3)
    return per_system_energy, total_charge, dipole


def fused_segment_props(indices, per_atom_energy, per_atom_charge, positions,
                        num_systems):
    """Differentiable fused segment reductions (custom_vjp around the Pallas kernel).

    The backward pass is a plain-JAX gather (g[indices]), which is all the force
    path (-d sum(E)/d positions) needs.
    """
    indices = indices.astype(jnp.int32)
    s = int(num_systems)

    @jax.custom_vjp
    def _f(e_atom, q_atom, pos):
        return _fused_segment_forward(indices, e_atom, q_atom, pos, s)

    def _fwd(e_atom, q_atom, pos):
        return _fused_segment_forward(indices, e_atom, q_atom, pos, s), (q_atom, pos)

    def _bwd(res, cotangents):
        q_atom, pos = res
        g_e, g_q, g_d = cotangents                           # (S,), (S,1), (S,3)
        g_d_atom = jnp.take(g_d, indices, axis=0)            # (N, 3)
        d_e_atom = jnp.take(g_e, indices, axis=0)            # (N,)
        d_q_atom = (jnp.take(g_q[:, 0], indices, axis=0)
                    + jnp.sum(g_d_atom * pos, axis=-1))      # (N,)
        d_pos = g_d_atom * q_atom[:, None]                   # (N, 3)
        return d_e_atom, d_q_atom, d_pos

    _f.defvjp(_fwd, _bwd)
    return _f(per_atom_energy, per_atom_charge, positions)


# ----------------------------------------------------------------------------
# Synthetic deterministic per-atom model (plain JAX glue; stands in for the
# external nn.Module the PyTorch module receives).
# ----------------------------------------------------------------------------
def init_model_params(key, hidden=32):
    k1, k2, k3, k4 = jax.random.split(key, 4)
    return {
        "w_e1": 0.1 * jax.random.normal(k1, (3, hidden), jnp.float32),
        "w_e2": 0.1 * jax.random.normal(k2, (hidden, 1), jnp.float32),
        "w_q1": 0.1 * jax.random.normal(k3, (3, hidden), jnp.float32),
        "w_q2": 0.1 * jax.random.normal(k4, (hidden, 1), jnp.float32),
    }


def model_forward(params, positions):
    """Per-atom predictions only; the per-system reductions live in the Pallas kernel."""
    h_e = jnp.tanh(positions @ params["w_e1"])
    per_atom_energy = (h_e @ params["w_e2"])[:, 0]            # (N,)
    h_q = jnp.tanh(positions @ params["w_q1"])
    per_atom_charge = (h_q @ params["w_q2"])[:, 0]            # (N,)
    return {"per_atom_energy": per_atom_energy, "per_atom_charge": per_atom_charge}


# ----------------------------------------------------------------------------
# CalculateProperties (JAX version of the PyTorch module)
# ----------------------------------------------------------------------------
class CalculateProperties:
    _SUPPORTED_PROPERTIES = [
        "per_atom_energy", "per_atom_force", "per_system_energy",
        "per_system_total_charge", "per_system_dipole_moment",
    ]

    def __init__(self, requested_properties):
        self.requested_properties = requested_properties
        self.include_force = "per_atom_force" in requested_properties
        self.include_charges = "per_system_total_charge" in requested_properties
        assert all(p in self._SUPPORTED_PROPERTIES for p in requested_properties), \
            f"Unsupported property requested: {requested_properties}"

    def forward(self, batch, params, train_mode=False):
        # `train_mode` (create_graph in PyTorch) is implicit in JAX: the custom_vjp
        # backward is itself differentiable, so higher-order grads compose.
        positions = batch["positions"]                        # (N, 3) f32
        indices = batch["atomic_subsystem_indices"]           # (N,)   int32
        s = batch["per_system_energy_true"].shape[0]

        def _predict(pos):
            pred = model_forward(params, pos)
            e_sys, qtot, dip = fused_segment_props(
                indices, pred["per_atom_energy"], pred["per_atom_charge"], pos, s)
            return e_sys.sum(), (e_sys, qtot, dip)

        if self.include_force:
            # Single forward + backward pass (mirrors torch.autograd.grad reusing
            # the already-built graph).
            (_, (e_sys, qtot, dip)), grad = jax.value_and_grad(
                _predict, has_aux=True)(positions)
        else:
            _, (e_sys, qtot, dip) = _predict(positions)
            grad = None

        out = {}
        # --- energies (_get_energies) ---
        out["per_system_energy_true"] = batch["per_system_energy_true"].astype(jnp.float32)
        out["per_system_energy_predict"] = e_sys[:, None]
        assert out["per_system_energy_true"].shape == out["per_system_energy_predict"].shape

        # --- forces (_get_forces) ---
        if self.include_force:
            out["per_atom_force_true"] = batch["per_atom_force_true"].astype(jnp.float32)
            out["per_atom_force_predict"] = -1.0 * grad

        # --- charges / dipole (_get_charges, _predict_dipole_moment) ---
        if self.include_charges:
            out["per_system_total_charge_predict"] = qtot
            out["per_system_total_charge_true"] = batch["per_system_total_charge"]
            out["per_system_dipole_moment_predict"] = dip
            out["per_system_dipole_moment_true"] = batch["per_system_dipole_moment_true"]
        return out


# ----------------------------------------------------------------------------
if __name__ == "__main__":
    key = jax.random.PRNGKey(0)
    k_pos, k_f, k_e, k_q, k_d, k_params = jax.random.split(key, 6)

    N, S = 32, 4  # 32 atoms, 4 systems (8 atoms each)
    positions = jax.random.normal(k_pos, (N, 3), jnp.float32)
    indices = jnp.repeat(jnp.arange(S, dtype=jnp.int32), N // S)

    batch = {
        "positions": positions,
        "atomic_subsystem_indices": indices,
        "per_system_energy_true": jax.random.normal(k_e, (S, 1), jnp.float32),
        "per_atom_force_true": jax.random.normal(k_f, (N, 3), jnp.float32),
        "per_system_total_charge": jax.random.normal(k_q, (S, 1), jnp.float32),
        "per_system_dipole_moment_true": jax.random.normal(k_d, (S, 3), jnp.float32),
    }
    params = init_model_params(k_params)

    calc = CalculateProperties(
        ["per_atom_force", "per_system_energy",
         "per_system_total_charge", "per_system_dipole_moment"])

    out = calc.forward(batch, params, train_mode=True)
    out = jax.tree_util.tree_map(jax.block_until_ready, out)

    # ---- pure-JAX reference checks of the fused Pallas reductions + force path ----
    pred = model_forward(params, positions)
    e_atom, q_atom = pred["per_atom_energy"], pred["per_atom_charge"]
    e_sys_ref = jax.ops.segment_sum(e_atom, indices, num_segments=S)
    qtot_ref = jax.ops.segment_sum(q_atom, indices, num_segments=S)[:, None]
    dip_ref = jax.ops.segment_sum(q_atom[:, None] * positions, indices, num_segments=S)

    def ref_total_energy(pos):
        p = model_forward(params, pos)
        return jax.ops.segment_sum(p["per_atom_energy"], indices, num_segments=S).sum()
    force_ref = -1.0 * jax.grad(ref_total_energy)(positions)

    np.testing.assert_allclose(np.asarray(out["per_system_energy_predict"]),
                               np.asarray(e_sys_ref[:, None]), rtol=1e-5, atol=1e-5)
    np.testing.assert_allclose(np.asarray(out["per_system_total_charge_predict"]),
                               np.asarray(qtot_ref), rtol=1e-5, atol=1e-5)
    np.testing.assert_allclose(np.asarray(out["per_system_dipole_moment_predict"]),
                               np.asarray(dip_ref), rtol=1e-5, atol=1e-5)
    np.testing.assert_allclose(np.asarray(out["per_atom_force_predict"]),
                               np.asarray(force_ref), rtol=1e-5, atol=1e-5)
    assert out["per_system_energy_predict"].shape == (S, 1)
    assert out["per_atom_force_predict"].shape == (N, 3)
    assert out["per_system_dipole_moment_predict"].shape == (S, 3)

    print("KERNEL_OK")
</pallas_src>

<mosaic_0001>
module attributes {stable_mosaic.version = 11 : i64} {
  func.func @_fused_segment_kernel(%arg0: i32, %arg1: memref<1x128xi32, #tpu.memory_space<vmem>>, %arg2: memref<128x128xf32, #tpu.memory_space<vmem>>, %arg3: memref<8x128xf32, #tpu.memory_space<vmem>>, %arg4: memref<8x128xf32, #tpu.memory_space<vmem>>) attributes {dimension_semantics = [#tpu.dimension_semantics<arbitrary>], iteration_bounds = array<i64: 1>, scalar_prefetch = 0 : i64, scratch_operands = 1 : i64, tpu.core_type = #tpu.core_type<tc>, window_params = [{transform_indices = @transform_0, window_bounds = array<i64: 1, 128>}, {transform_indices = @transform_1, window_bounds = array<i64: 128, 128>}, {pipeline_mode = #tpu.pipeline_mode<synchronous>, transform_indices = @transform_2, window_bounds = array<i64: 8, 128>}]} {
    %c0_i32 = arith.constant 0 : i32
    %0 = arith.cmpi eq, %arg0, %c0_i32 : i32
    %1 = arith.extui %0 : i1 to i32
    %c0_i32_0 = arith.constant 0 : i32
    %2 = arith.cmpi ne, %1, %c0_i32_0 : i32
    scf.if %2 {
      %cst_10 = arith.constant 0.000000e+00 : f32
      %27 = vector.broadcast %cst_10 : f32 to vector<8x128xf32>
      %c0_11 = arith.constant 0 : index
      %c0_12 = arith.constant 0 : index
      %28 = vector.load %arg4[%c0_11, %c0_12] : memref<8x128xf32, #tpu.memory_space<vmem>>, vector<8x128xf32>
      tpu.vector_store %arg4[%c0_11, %c0_12], %27 {strides = array<i32>} : memref<8x128xf32, #tpu.memory_space<vmem>>, vector<8x128xf32>,
    } else {
    }
    %c0 = arith.constant 0 : index
    %c0_1 = arith.constant 0 : index
    %3 = vector.load %arg1[%c0, %c0_1] : memref<1x128xi32, #tpu.memory_space<vmem>>, vector<1x128xi32>
    %4 = tpu.iota {dimensions = array<i32: 0>} : vector<8x128xi32>
    %5 = vector.broadcast %3 : vector<1x128xi32> to vector<8x128xi32>
    %6 = arith.cmpi eq, %4, %5 : vector<8x128xi32>
    %7 = arith.extui %6 : vector<8x128xi1> to vector<8x128xi32>
    %8 = arith.sitofp %7 : vector<8x128xi32> to vector<8x128xf32>
    %c0_2 = arith.constant 0 : index
    %c0_3 = arith.constant 0 : index
    %9 = vector.load %arg2[%c0_2, %c0_3] : memref<128x128xf32, #tpu.memory_space<vmem>>, vector<128x128xf32>
    %10 = vector.extract_strided_slice %9 {offsets = [0, 1], sizes = [128, 1], strides = [1, 1]} : vector<128x128xf32> to vector<128x1xf32>
    %11 = tpu.iota {dimensions = array<i32: 1>} : vector<128x128xi32>
    %c2_i32 = arith.constant 2 : i32
    %12 = vector.broadcast %c2_i32 : i32 to vector<128x128xi32>
    %13 = arith.cmpi sge, %11, %12 : vector<128x128xi32>
    %c5_i32 = arith.constant 5 : i32
    %14 = vector.broadcast %c5_i32 : i32 to vector<128x128xi32>
    %15 = arith.cmpi slt, %11, %14 : vector<128x128xi32>
    %16 = arith.andi %13, %15 : vector<128x128xi1>
    %17 = vector.broadcast %10 : vector<128x1xf32> to vector<128x128xf32>
    %18 = arith.mulf %9, %17 : vector<128x128xf32>
    %19 = arith.select %16, %18, %9 : vector<128x128xi1>, vector<128x128xf32>
    %c0_4 = arith.constant 0 : index
    %c0_5 = arith.constant 0 : index
    %20 = vector.load %arg4[%c0_4, %c0_5] : memref<8x128xf32, #tpu.memory_space<vmem>>, vector<8x128xf32>
    %cst = arith.constant dense<0.000000e+00> : vector<8x128xf32>
    %21 = tpu.matmul %8, %19, %cst {dimension_numbers = #tpu.dot_dimension_numbers<[1], [0], [0], [1], [0, 0, 1, 1], [], []>} : vector<8x128xf32>, vector<128x128xf32>, vector<8x128xf32> -> vector<8x128xf32>
    %22 = arith.addf %20, %21 : vector<8x128xf32>
    %c0_6 = arith.constant 0 : index
    %c0_7 = arith.constant 0 : index
    %23 = vector.load %arg4[%c0_6, %c0_7] : memref<8x128xf32, #tpu.memory_space<vmem>>, vector<8x128xf32>
    tpu.vector_store %arg4[%c0_6, %c0_7], %22 {strides = array<i32>} : memref<8x128xf32, #tpu.memory_space<vmem>>, vector<8x128xf32>,
    %c0_i32_8 = arith.constant 0 : i32
    %24 = arith.cmpi eq, %arg0, %c0_i32_8 : i32
    %25 = arith.extui %24 : i1 to i32
    %c0_i32_9 = arith.constant 0 : i32
    %26 = arith.cmpi ne, %25, %c0_i32_9 : i32
    scf.if %26 {
      %c0_10 = arith.constant 0 : index
      %c0_11 = arith.constant 0 : index
      %27 = vector.load %arg4[%c0_10, %c0_11] : memref<8x128xf32, #tpu.memory_space<vmem>>, vector<8x128xf32>
      %c0_12 = arith.constant 0 : index
      %c0_13 = arith.constant 0 : index
      %28 = vector.load %arg3[%c0_12, %c0_13] : memref<8x128xf32, #tpu.memory_space<vmem>>, vector<8x128xf32>
      tpu.vector_store %arg3[%c0_12, %c0_13], %27 {strides = array<i32>} : memref<8x128xf32, #tpu.memory_space<vmem>>, vector<8x128xf32>,
    } else {
    }
    return
  }
  func.func @transform_0(%arg0: i32) -> (i32, i32) {
    %c0_i32 = arith.constant 0 : i32
    %c0_i32_0 = arith.constant 0 : i32
    return %c0_i32, %arg0 : i32, i32
  }
  func.func @transform_1(%arg0: i32) -> (i32, i32) {
    %c0_i32 = arith.constant 0 : i32
    %c0_i32_0 = arith.constant 0 : i32
    return %arg0, %c0_i32 : i32, i32
  }
  func.func @transform_2(%arg0: i32) -> (i32, i32) {
    %c0_i32 = arith.constant 0 : i32
    %c0_i32_0 = arith.constant 0 : i32
    %c0_i32_1 = arith.constant 0 : i32
    return %c0_i32, %c0_i32_0 : i32, i32
  }
}

</mosaic_0001>

<llo_original>
// kernel: tpu_custom_call.1
$region0: #{tpu_custom_call.1}
  #allocation0 [shape = 'u32[]', space=smem, size = 0x4, offset = 0x4, fixed_abs, tag = 'smem constant byte address 0x4 - core index']
  #allocation1 [shape = 'u32[144,128]{1,0:T(1,128)}', space=vmem, size = 0x12000, scoped, tag = 'internal scratch']
  #allocation2 [shape = 'f32[8,128]{1,0:T(8,128)}', space=vmem, size = 0x1000, scoped, tag = 'scratch operand']
  %s0 = inlined_call_operand.hbm [shape: s32[1,128], index: 0, kind: input, shape index: {}]
  %s1 = inlined_call_operand.hbm [shape: f32[128,128], index: 1, kind: input, shape index: {}]
  %s2 = inlined_call_operand.hbm [shape: f32[8,128], index: 2, kind: output, shape index: {}]
  %s3 = sld [smem:[#allocation0]]
  $region34: #{tpu_custom_call.1} parent=0
    _
  %s5 = ssub.s32 1, %s3
  %s6 = scalar_select 0, %s5, %s3
  $region1: #{tpu_custom_call.1} parent=0
    #allocation3 [shape = 'u8[512]{0}', space=vmem, size = 0x400, scoped, tag = 'input window, operand 0, single buffered']
    #allocation4 [shape = 's32[1]{0}', space=sflag, size = 0x4, scoped, tag = 'scoped memory for tpu_custom_call.1']
    #allocation5 [shape = 's32[1]{0}', space=sflag, size = 0x4, scoped, tag = 'scoped memory for tpu_custom_call.1']
    #allocation6 [shape = 'u8[65536]{0}', space=vmem, size = 0x10000, scoped, tag = 'input window, operand 1, single buffered']
    #allocation7 [shape = 's32[1]{0}', space=sflag, size = 0x4, scoped, tag = 'scoped memory for tpu_custom_call.1']
    #allocation8 [shape = 'u8[4096]{0}', space=vmem, size = 0x1000, scoped, tag = 'output window, operand 0, single buffered']
    %7 = vsyncpa [#allocation4], 0
    %8 = vsyncpa [#allocation7], 0
    %9 = vsyncpa [#allocation5], 0
    // Predicated region
    $region2: #{tpu_custom_call.1} parent=1 // pred_check
      _
    $region3: #{tpu_custom_call.1} parent=1 // pred_check_branch
      %11 = sbr.rel (0) target = $region5
    $region4: #{tpu_custom_call.1} parent=1 // pred_region
      %s13 = ssub.s32 16, 16
      %14 = vsyncadd [#allocation4], %s13
      %s16 = sshll.u32 [#allocation3], 4
      %s17 = int_to_ptr.vmem [resolvable:$true] %s16
      %19 = dma.hbm_to_vmem [thread:$0]  %s0, 16, %s17, [#allocation4]
    $region5: #{tpu_custom_call.1} parent=1 // pred_fallthru
      _
    // Predicated region
    $region6: #{tpu_custom_call.1} parent=1 // pred_check
      _
    $region7: #{tpu_custom_call.1} parent=1 // pred_check_branch
      %21 = sbr.rel (0) target = $region9
    $region8: #{tpu_custom_call.1} parent=1 // pred_region
      %s23 = ssub.s32 2048, 2048
      %24 = vsyncadd [#allocation7], %s23
      %s25 = sshll.u32 [#allocation6], 4
      %s26 = int_to_ptr.vmem [resolvable:$true] %s25
      %31 = dma.hbm_to_vmem [thread:$0]  %s1, 2048, %s26, [#allocation7], 128, 128, 8
    $region9: #{tpu_custom_call.1} parent=1 // pred_fallthru
      _
    // Predicated region
    $region10: #{tpu_custom_call.1} parent=1 // pred_check
      _
    $region11: #{tpu_custom_call.1} parent=1 // pred_check_branch
      %33 = sbr.rel (0) target = $region13
    $region12: #{tpu_custom_call.1} parent=1 // pred_region
      %34 = dma.done [#allocation4], 16
    $region13: #{tpu_custom_call.1} parent=1 // pred_fallthru
      _
    // Predicated region
    $region14: #{tpu_custom_call.1} parent=1 // pred_check
      _
    $region15: #{tpu_custom_call.1} parent=1 // pred_check_branch
      %36 = sbr.rel (0) target = $region17
    $region16: #{tpu_custom_call.1} parent=1 // pred_region
      %37 = dma.done [#allocation7], 2048
    $region17: #{tpu_custom_call.1} parent=1 // pred_fallthru
      _
    %p38 = scmp.eq.s32.totalorder 0, 0
    // Predicated region
    $region18: #{tpu_custom_call.1} parent=1 // pred_check
      %p39 = pneg %p38
    $region19: #{tpu_custom_call.1} parent=1 // pred_check_branch
      %41 = sbr.rel (%p39) target = $region21
    $region20: #{tpu_custom_call.1} parent=1 // pred_region
      %42 = vst [vmem:[#allocation2] sm:$0xff] 0.0
    $region21: #{tpu_custom_call.1} parent=1 // pred_fallthru
      _
    %v43 = vld [vmem:[#allocation3] sm:$0x1]
    %v44 = vlaneseq
    %v45 = vshrl.u32 %v44, 7
    %v46 = vlaneseq
    %v47 = vshrl.u32 %v46, 7
    %v48 = vsub.s32 0, %v47
    %v49 = vrot.slane %v43, %v48
    %vm50 = vcmp.eq.s32.totalorder %v45, %v49
    %v51 = vsel %vm50, 1, 0
    %v52 = vcvt.s32.f32 %v51
    %v53 = vld [vmem:[#allocation6] sm:$0xff]
    %v54 = vld [vmem:[#allocation6 + $0x8] sm:$0xff]
    %v55 = vld [vmem:[#allocation6 + $0x10] sm:$0xff]
    %v56 = vld [vmem:[#allocation6 + $0x18] sm:$0xff]
    %v57 = vld [vmem:[#allocation6 + $0x20] sm:$0xff]
    %v58 = vld [vmem:[#allocation6 + $0x28] sm:$0xff]
    %v59 = vld [vmem:[#allocation6 + $0x30] sm:$0xff]
    %v60 = vld [vmem:[#allocation6 + $0x38] sm:$0xff]
    %v61 = vld [vmem:[#allocation6 + $0x40] sm:$0xff]
    %v62 = vld [vmem:[#allocation6 + $0x48] sm:$0xff]
    %v63 = vld [vmem:[#allocation6 + $0x50] sm:$0xff]
    %v64 = vld [vmem:[#allocation6 + $0x58] sm:$0xff]
    %v65 = vld [vmem:[#allocation6 + $0x60] sm:$0xff]
    %v66 = vld [vmem:[#allocation6 + $0x68] sm:$0xff]
    %v67 = vld [vmem:[#allocation6 + $0x70] sm:$0xff]
    %v68 = vld [vmem:[#allocation6 + $0x78] sm:$0xff]
    %v69 = vlaneseq
    %v70 = vand.u32 %v69, 127
    %vm71 = vcmp.ge.s32.totalorder %v70, 2
    %vm72 = vcmp.lt.s32.totalorder %v70, 5
    %vm73 = vmand %vm71, %vm72
    %75 = vset.pattern.permute.xlu0 1
    %76 = vperm.xlu0 %75, %v53
    %v77 = vpop.permute.xlu0 %76
    %80 = vset.pattern.permute.xlu0 1
    %81 = vperm.xlu0 %80, %v54
    %v82 = vpop.permute.xlu0 %81
    %85 = vset.pattern.permute.xlu0 1
    %86 = vperm.xlu0 %85, %v55
    %v87 = vpop.permute.xlu0 %86
    %90 = vset.pattern.permute.xlu0 1
    %91 = vperm.xlu0 %90, %v56
    %v92 = vpop.permute.xlu0 %91
    %95 = vset.pattern.permute.xlu0 1
    %96 = vperm.xlu0 %95, %v57
    %v97 = vpop.permute.xlu0 %96
    %100 = vset.pattern.permute.xlu0 1
    %101 = vperm.xlu0 %100, %v58
    %v102 = vpop.permute.xlu0 %101
    %105 = vset.pattern.permute.xlu0 1
    %106 = vperm.xlu0 %105, %v59
    %v107 = vpop.permute.xlu0 %106
    %110 = vset.pattern.permute.xlu0 1
    %111 = vperm.xlu0 %110, %v60
    %v112 = vpop.permute.xlu0 %111
    %115 = vset.pattern.permute.xlu0 1
    %116 = vperm.xlu0 %115, %v61
    %v117 = vpop.permute.xlu0 %116
    %120 = vset.pattern.permute.xlu0 1
    %121 = vperm.xlu0 %120, %v62
    %v122 = vpop.permute.xlu0 %121
    %125 = vset.pattern.permute.xlu0 1
    %126 = vperm.xlu0 %125, %v63
    %v127 = vpop.permute.xlu0 %126
    %130 = vset.pattern.permute.xlu0 1
    %131 = vperm.xlu0 %130, %v64
    %v132 = vpop.permute.xlu0 %131
    %135 = vset.pattern.permute.xlu0 1
    %136 = vperm.xlu0 %135, %v65
    %v137 = vpop.permute.xlu0 %136
    %140 = vset.pattern.permute.xlu0 1
    %141 = vperm.xlu0 %140, %v66
    %v142 = vpop.permute.xlu0 %141
    %145 = vset.pattern.permute.xlu0 1
    %146 = vperm.xlu0 %145, %v67
    %v147 = vpop.permute.xlu0 %146
    %150 = vset.pattern.permute.xlu0 1
    %151 = vperm.xlu0 %150, %v68
    %v152 = vpop.permute.xlu0 %151
    %v154 = vmul.f32 %v53, %v77
    %v155 = vmul.f32 %v54, %v82
    %v156 = vmul.f32 %v55, %v87
    %v157 = vmul.f32 %v56, %v92
    %v158 = vmul.f32 %v57, %v97
    %v159 = vmul.f32 %v58, %v102
    %v160 = vmul.f32 %v59, %v107
    %v161 = vmul.f32 %v60, %v112
    %v162 = vmul.f32 %v61, %v117
    %v163 = vmul.f32 %v62, %v122
    %v164 = vmul.f32 %v63, %v127
    %v165 = vmul.f32 %v64, %v132
    %v166 = vmul.f32 %v65, %v137
    %v167 = vmul.f32 %v66, %v142
    %v168 = vmul.f32 %v67, %v147
    %v169 = vmul.f32 %v68, %v152
    %v170 = vsel %vm73, %v154, %v53
    %v171 = vsel %vm73, %v155, %v54
    %v172 = vsel %vm73, %v156, %v55
    %v173 = vsel %vm73, %v157, %v56
    %v174 = vsel %vm73, %v158, %v57
    %v175 = vsel %vm73, %v159, %v58
    %v176 = vsel %vm73, %v160, %v59
    %v177 = vsel %vm73, %v161, %v60
    %v178 = vsel %vm73, %v162, %v61
    %v179 = vsel %vm73, %v163, %v62
    %v180 = vsel %vm73, %v164, %v63
    %v181 = vsel %vm73, %v165, %v64
    %v182 = vsel %vm73, %v166, %v65
    %v183 = vsel %vm73, %v167, %v66
    %v184 = vsel %vm73, %v168, %v67
    %v185 = vsel %vm73, %v169, %v68
    %v186 = vld [vmem:[#allocation2] sm:$0xff]
    %187 = vmatprep.subr.mxu0 0.0
    %188 = vmatpush1.msra.mxu0 %v170
    %189 = vmatprep.subr.mxu0 0.0
    %190 = vmatpush1.msra.mxu0 %v171
    %191 = vmatprep.subr.mxu0 0.0
    %192 = vmatpush1.msra.mxu0 %v172
    %193 = vmatprep.subr.mxu0 0.0
    %194 = vmatpush1.msra.mxu0 %v173
    %195 = vmatprep.subr.mxu0 0.0
    %196 = vmatpush1.msra.mxu0 %v174
    %197 = vmatprep.subr.mxu0 0.0
    %198 = vmatpush1.msra.mxu0 %v175
    %199 = vmatprep.subr.mxu0 0.0
    %200 = vmatpush1.msra.mxu0 %v176
    %201 = vmatprep.subr.mxu0 0.0
    %202 = vmatpush1.msra.mxu0 %v177
    %203 = vmatprep.subr.mxu0 0.0
    %204 = vmatpush1.msra.mxu0 %v178
    %205 = vmatprep.subr.mxu0 0.0
    %206 = vmatpush1.msra.mxu0 %v179
    %207 = vmatprep.subr.mxu0 0.0
    %208 = vmatpush1.msra.mxu0 %v180
    %209 = vmatprep.subr.mxu0 0.0
    %210 = vmatpush1.msra.mxu0 %v181
    %211 = vmatprep.subr.mxu0 0.0
    %212 = vmatpush1.msra.mxu0 %v182
    %213 = vmatprep.subr.mxu0 0.0
    %214 = vmatpush1.msra.mxu0 %v183
    %215 = vmatprep.subr.mxu0 0.0
    %216 = vmatpush1.msra.mxu0 %v184
    %217 = vmatprep.subr.mxu0 0.0
    %218 = vmatpush1.msra.mxu0 %v185
    %219 = vmatprep.subr.mxu0 0.0
    %220 = vmatpush1.msra.mxu0 0.0
    %221 = vmatprep.subr.mxu0 0.0
    %222 = vmatpush1.msra.mxu0 0.0
    %223 = vmatprep.subr.mxu0 0.0
    %224 = vmatpush1.msra.mxu0 0.0
    %225 = vmatprep.subr.mxu0 0.0
    %226 = vmatpush1.msra.mxu0 0.0
    %227 = vmatprep.subr.mxu0 0.0
    %228 = vmatpush1.msra.mxu0 0.0
    %229 = vmatprep.subr.mxu0 0.0
    %230 = vmatpush1.msra.mxu0 0.0
    %231 = vmatprep.subr.mxu0 0.0
    %232 = vmatpush1.msra.mxu0 0.0
    %233 = vmatprep.subr.mxu0 0.0
    %234 = vmatpush1.msra.mxu0 0.0
    %235 = vmatprep.subr.mxu0 0.0
    %236 = vmatpush1.msra.mxu0 0.0
    %237 = vmatprep.subr.mxu0 0.0
    %238 = vmatpush1.msra.mxu0 0.0
    %239 = vmatprep.subr.mxu0 0.0
    %240 = vmatpush1.msra.mxu0 0.0
    %241 = vmatprep.subr.mxu0 0.0
    %242 = vmatpush1.msra.mxu0 0.0
    %243 = vmatprep.subr.mxu0 0.0
    %244 = vmatpush1.msra.mxu0 0.0
    %245 = vmatprep.subr.mxu0 0.0
    %246 = vmatpush1.msra.mxu0 0.0
    %247 = vmatprep.subr.mxu0 0.0
    %248 = vmatpush1.msra.mxu0 0.0
    %249 = vmatprep.subr.mxu0 0.0
    %250 = vmatpush1.msra.mxu0 0.0
    %251 = vmatprep.mubr.f32.mxu0 0.0
    %252 = vmatmul.mubr.f32.gmra.mrb[0].mxu0 %v52
    %v253 = vpop.f32.mrb[0].mxu0
    %v254 = vadd.f32 0.0, %v253
    %v255 = vpop.f32.mrb[0].mxu0
    %256 = vdwg.mxu0
    %v257 = vadd.f32 %v186, %v254
    %258 = vst [vmem:[#allocation2] sm:$0xff] %v257
    // Predicated region
    $region22: #{tpu_custom_call.1} parent=1 // pred_check
      %p259 = pneg %p38
    $region23: #{tpu_custom_call.1} parent=1 // pred_check_branch
      %261 = sbr.rel (%p259) target = $region25
    $region24: #{tpu_custom_call.1} parent=1 // pred_region
      %v262 = vld [vmem:[#allocation2] sm:$0xff]
      %263 = vst [vmem:[#allocation8] sm:$0xff] %v262
    $region25: #{tpu_custom_call.1} parent=1 // pred_fallthru
      _
    // Predicated region
    $region26: #{tpu_custom_call.1} parent=1 // pred_check
      _
    $region27: #{tpu_custom_call.1} parent=1 // pred_check_branch
      %265 = sbr.rel (0) target = $region29
    $region28: #{tpu_custom_call.1} parent=1 // pred_region
      %s267 = ssub.s32 128, 128
      %268 = vsyncadd [#allocation5], %s267
      %s270 = sshll.u32 [#allocation8], 4
      %s271 = int_to_ptr.vmem [resolvable:$true] %s270
      %273 = dma.vmem_to_hbm [thread:$0]  %s271, 128, %s2, [#allocation5]
    $region29: #{tpu_custom_call.1} parent=1 // pred_fallthru
      _
    // Predicated region
    $region30: #{tpu_custom_call.1} parent=1 // pred_check
      _
    $region31: #{tpu_custom_call.1} parent=1 // pred_check_branch
      %275 = sbr.rel (0) target = $region33
    $region32: #{tpu_custom_call.1} parent=1 // pred_region
      %276 = dma.done [#allocation5], 128
    $region33: #{tpu_custom_call.1} parent=1 // pred_fallthru
      _
    %277 = vsyncpa [#allocation4], 1
    %278 = vsyncpa [#allocation7], 1
    %279 = vsyncpa [#allocation5], 1

</llo_original>
